<compile_context>
chip_gen: v6e
topology: v6e:2x2x1
jax: 0.10.0
libtpu: 0.0.40
codegen_flags: <defaults>
</compile_context>

<pallas_src>
import functools

import jax
import jax.numpy as jnp
from jax import lax
from jax.experimental import pallas as pl
from jax.experimental.pallas import tpu as pltpu

ROW_PAD = 8      # sublane-aligned row padding used for the in-kernel activation
FEAT_PAD = 128   # lane-aligned feature padding (all layer widths <= 128)

SKILL_HIDDEN = 10
SKILL_OUTPUT = 5
CONTROLLER_HIDDEN = 20
NUM_LAYERS = 4


def _skill_only_kernel(x_ref, w_ref, b_ref, so_ref, out_ref):
    """x_ref: (1,128) f32; w_ref: (4,128,128) bf16; b_ref: (4,1,128) f32;
    so_ref: (2,128) f32 (row 0 = scale, row 1 = offset); out_ref: (1,128) f32.
    """
    # Build the (8,128) activation tile in-register (one sublane broadcast).
    # All 8 rows carry the same obs row; only row 0 is read out at the end.
    h = jnp.broadcast_to(x_ref[...], (ROW_PAD, FEAT_PAD))       # (8,128) f32
    for i in range(NUM_LAYERS):                                  # static unroll
        # Native bf16 x bf16 MXU matmul, f32 accumulation; tanh/bias in f32.
        acc = jnp.dot(h.astype(jnp.bfloat16), w_ref[i],
                      preferred_element_type=jnp.float32)        # (8,128) f32
        h = jnp.tanh(acc + b_ref[i])                             # (8,128) f32
    # torch: output_t[1] = (output_t[1] + 1) / 2  ->  h*scale + offset, where
    # scale/offset differ from (1,0) only at column 1 (precomputed outside).
    out_ref[...] = h[0:1, :] * so_ref[0:1, :] + so_ref[1:2, :]


def init_params(key, obs_size, action_size):
    """Deterministic torch-Linear-style init; weights stored as (in, out)."""
    dims = [(obs_size, SKILL_HIDDEN),
            (SKILL_HIDDEN, SKILL_OUTPUT),
            (SKILL_OUTPUT, CONTROLLER_HIDDEN),
            (CONTROLLER_HIDDEN, action_size)]
    params = []
    for fan_in, fan_out in dims:
        key, kw, kb = jax.random.split(key, 3)
        bound = 1.0 / jnp.sqrt(float(fan_in))
        w = jax.random.uniform(kw, (fan_in, fan_out), jnp.float32, -bound, bound)
        b = jax.random.uniform(kb, (fan_out,), jnp.float32, -bound, bound)
        params.append((w, b))
    return params


def prepare_params(params):
    """One-time padding + stacking + bf16 cast (hoisted out of the hot path)."""
    assert len(params) == NUM_LAYERS
    action_size = params[-1][0].shape[1]
    assert action_size >= 2, "output_t[1] rescale requires action_size >= 2"

    w_stack = jnp.zeros((NUM_LAYERS, FEAT_PAD, FEAT_PAD), jnp.float32)
    b_stack = jnp.zeros((NUM_LAYERS, 1, FEAT_PAD), jnp.float32)
    for i, (w, b) in enumerate(params):
        fan_in, fan_out = w.shape
        assert fan_in <= FEAT_PAD and fan_out <= FEAT_PAD, (
            f"layer {i} dims ({fan_in},{fan_out}) exceed FEAT_PAD={FEAT_PAD}")
        w_stack = w_stack.at[i, :fan_in, :fan_out].set(w.astype(jnp.float32))
        b_stack = b_stack.at[i, 0, :fan_out].set(b.astype(jnp.float32))

    # Epilogue rescale as one FMA: identity everywhere except column 1,
    # where y -> 0.5*y + 0.5  (i.e. (tanh(..)+1)/2).
    scale = jnp.ones((FEAT_PAD,), jnp.float32).at[1].set(0.5)
    offset = jnp.zeros((FEAT_PAD,), jnp.float32).at[1].set(0.5)
    so_stack = jnp.stack([scale, offset], axis=0)                # (2, 128) f32

    # bf16 weights: native MXU input dtype and half the HBM->VMEM bytes.
    return w_stack.astype(jnp.bfloat16), b_stack, so_stack, action_size


@functools.partial(jax.jit, static_argnames=("action_size",))
def _forward_impl(obs, w_stack, b_stack, so_stack, *, action_size):
    obs_size = obs.shape[0]
    # Single lane-padded row; the (8,128) activation tile is built in-kernel.
    x = jnp.pad(obs.astype(jnp.float32), (0, FEAT_PAD - obs_size))
    x = x.reshape(1, FEAT_PAD)

    cost = pl.CostEstimate(
        flops=2 * NUM_LAYERS * ROW_PAD * FEAT_PAD * FEAT_PAD,
        transcendentals=NUM_LAYERS * ROW_PAD * FEAT_PAD,
        bytes_accessed=(w_stack.size * 2           # bf16 weights
                        + b_stack.size * 4         # f32 biases
                        + so_stack.size * 4        # f32 scale/offset
                        + 2 * FEAT_PAD * 4))       # x in + out (one row each)

    out = pl.pallas_call(
        _skill_only_kernel,
        out_shape=jax.ShapeDtypeStruct((1, FEAT_PAD), jnp.float32),
        in_specs=[pl.BlockSpec(memory_space=pltpu.MemorySpace.VMEM)] * 4,
        out_specs=pl.BlockSpec(memory_space=pltpu.MemorySpace.VMEM),
        cost_estimate=cost,
    )(x, w_stack, b_stack, so_stack)
    return out[0, :action_size]


def skill_only_net_forward(obs, prepared):
    w_stack, b_stack, so_stack, action_size = prepared
    return _forward_impl(obs, w_stack, b_stack, so_stack, action_size=action_size)


def _reference_forward(obs, params):
    """Pure-JAX reference mirroring the kernel numerics (bf16 dot, f32 acc)."""
    y = obs.astype(jnp.float32)
    for (w, b) in params:
        y = jnp.tanh(
            jnp.dot(y.astype(jnp.bfloat16), w.astype(jnp.bfloat16),
                    preferred_element_type=jnp.float32) + b)
    return y.at[1].set((y[1] + 1.0) / 2.0)


if __name__ == "__main__":
    obs_size = 8
    action_size = 4

    key = jax.random.PRNGKey(0)
    key, k_obs = jax.random.split(key)
    obs = jax.random.normal(k_obs, (obs_size,), jnp.float32)
    params = init_params(key, obs_size, action_size)

    prepared = prepare_params(params)          # one-time prep (not in hot path)
    out = jax.block_until_ready(skill_only_net_forward(obs, prepared))
    ref = _reference_forward(obs, params)

    assert out.shape == (action_size,), out.shape
    # bf16 weights + bf16 dot inputs -> small drift vs pure-f32; reference uses
    # the same bf16 rounding, so this tolerance is comfortable.
    assert jnp.allclose(out, ref, atol=5e-3, rtol=5e-3), (out, ref)
    print("KERNEL_OK")
</pallas_src>

<mosaic_0001>
module attributes {stable_mosaic.version = 11 : i64} {
  func.func @_skill_only_kernel(%arg0: memref<1x128xf32, #tpu.memory_space<vmem>>, %arg1: memref<4x128x128xbf16, #tpu.memory_space<vmem>>, %arg2: memref<4x1x128xf32, #tpu.memory_space<vmem>>, %arg3: memref<2x128xf32, #tpu.memory_space<vmem>>, %arg4: memref<1x128xf32, #tpu.memory_space<vmem>>) attributes {dimension_semantics = [], scalar_prefetch = 0 : i64, scratch_operands = 0 : i64, tpu.core_type = #tpu.core_type<tc>} {
    %c0 = arith.constant 0 : index
    %c0_0 = arith.constant 0 : index
    %0 = vector.load %arg0[%c0, %c0_0] : memref<1x128xf32, #tpu.memory_space<vmem>>, vector<1x128xf32>
    %1 = vector.shape_cast %0 : vector<1x128xf32> to vector<1x128xf32>
    %2 = vector.broadcast %1 : vector<1x128xf32> to vector<8x128xf32>
    %3 = arith.truncf %2 : vector<8x128xf32> to vector<8x128xbf16>
    %c0_1 = arith.constant 0 : index
    %c0_2 = arith.constant 0 : index
    %c0_3 = arith.constant 0 : index
    %4 = vector.load %arg1[%c0_1, %c0_2, %c0_3] : memref<4x128x128xbf16, #tpu.memory_space<vmem>>, vector<1x128x128xbf16>
    %5 = vector.shape_cast %4 : vector<1x128x128xbf16> to vector<128x128xbf16>
    %cst = arith.constant dense<0.000000e+00> : vector<8x128xf32>
    %6 = tpu.matmul %3, %5, %cst {dimension_numbers = #tpu.dot_dimension_numbers<[1], [0], [0], [1], [0, 0, 1, 1], [], []>} : vector<8x128xbf16>, vector<128x128xbf16>, vector<8x128xf32> -> vector<8x128xf32>
    %c0_4 = arith.constant 0 : index
    %c0_5 = arith.constant 0 : index
    %c0_6 = arith.constant 0 : index
    %7 = vector.load %arg2[%c0_4, %c0_5, %c0_6] : memref<4x1x128xf32, #tpu.memory_space<vmem>>, vector<1x1x128xf32>
    %8 = vector.shape_cast %7 : vector<1x1x128xf32> to vector<1x128xf32>
    %9 = vector.broadcast %8 : vector<1x128xf32> to vector<8x128xf32>
    %10 = arith.addf %6, %9 : vector<8x128xf32>
    %11 = math.tanh %10 : vector<8x128xf32>
    %12 = arith.truncf %11 : vector<8x128xf32> to vector<8x128xbf16>
    %c1 = arith.constant 1 : index
    %c0_7 = arith.constant 0 : index
    %c0_8 = arith.constant 0 : index
    %13 = vector.load %arg1[%c1, %c0_7, %c0_8] : memref<4x128x128xbf16, #tpu.memory_space<vmem>>, vector<1x128x128xbf16>
    %14 = vector.shape_cast %13 : vector<1x128x128xbf16> to vector<128x128xbf16>
    %cst_9 = arith.constant dense<0.000000e+00> : vector<8x128xf32>
    %15 = tpu.matmul %12, %14, %cst_9 {dimension_numbers = #tpu.dot_dimension_numbers<[1], [0], [0], [1], [0, 0, 1, 1], [], []>} : vector<8x128xbf16>, vector<128x128xbf16>, vector<8x128xf32> -> vector<8x128xf32>
    %c1_10 = arith.constant 1 : index
    %c0_11 = arith.constant 0 : index
    %c0_12 = arith.constant 0 : index
    %16 = vector.load %arg2[%c1_10, %c0_11, %c0_12] : memref<4x1x128xf32, #tpu.memory_space<vmem>>, vector<1x1x128xf32>
    %17 = vector.shape_cast %16 : vector<1x1x128xf32> to vector<1x128xf32>
    %18 = vector.broadcast %17 : vector<1x128xf32> to vector<8x128xf32>
    %19 = arith.addf %15, %18 : vector<8x128xf32>
    %20 = math.tanh %19 : vector<8x128xf32>
    %21 = arith.truncf %20 : vector<8x128xf32> to vector<8x128xbf16>
    %c2 = arith.constant 2 : index
    %c0_13 = arith.constant 0 : index
    %c0_14 = arith.constant 0 : index
    %22 = vector.load %arg1[%c2, %c0_13, %c0_14] : memref<4x128x128xbf16, #tpu.memory_space<vmem>>, vector<1x128x128xbf16>
    %23 = vector.shape_cast %22 : vector<1x128x128xbf16> to vector<128x128xbf16>
    %cst_15 = arith.constant dense<0.000000e+00> : vector<8x128xf32>
    %24 = tpu.matmul %21, %23, %cst_15 {dimension_numbers = #tpu.dot_dimension_numbers<[1], [0], [0], [1], [0, 0, 1, 1], [], []>} : vector<8x128xbf16>, vector<128x128xbf16>, vector<8x128xf32> -> vector<8x128xf32>
    %c2_16 = arith.constant 2 : index
    %c0_17 = arith.constant 0 : index
    %c0_18 = arith.constant 0 : index
    %25 = vector.load %arg2[%c2_16, %c0_17, %c0_18] : memref<4x1x128xf32, #tpu.memory_space<vmem>>, vector<1x1x128xf32>
    %26 = vector.shape_cast %25 : vector<1x1x128xf32> to vector<1x128xf32>
    %27 = vector.broadcast %26 : vector<1x128xf32> to vector<8x128xf32>
    %28 = arith.addf %24, %27 : vector<8x128xf32>
    %29 = math.tanh %28 : vector<8x128xf32>
    %30 = arith.truncf %29 : vector<8x128xf32> to vector<8x128xbf16>
    %c3 = arith.constant 3 : index
    %c0_19 = arith.constant 0 : index
    %c0_20 = arith.constant 0 : index
    %31 = vector.load %arg1[%c3, %c0_19, %c0_20] : memref<4x128x128xbf16, #tpu.memory_space<vmem>>, vector<1x128x128xbf16>
    %32 = vector.shape_cast %31 : vector<1x128x128xbf16> to vector<128x128xbf16>
    %cst_21 = arith.constant dense<0.000000e+00> : vector<8x128xf32>
    %33 = tpu.matmul %30, %32, %cst_21 {dimension_numbers = #tpu.dot_dimension_numbers<[1], [0], [0], [1], [0, 0, 1, 1], [], []>} : vector<8x128xbf16>, vector<128x128xbf16>, vector<8x128xf32> -> vector<8x128xf32>
    %c3_22 = arith.constant 3 : index
    %c0_23 = arith.constant 0 : index
    %c0_24 = arith.constant 0 : index
    %34 = vector.load %arg2[%c3_22, %c0_23, %c0_24] : memref<4x1x128xf32, #tpu.memory_space<vmem>>, vector<1x1x128xf32>
    %35 = vector.shape_cast %34 : vector<1x1x128xf32> to vector<1x128xf32>
    %36 = vector.broadcast %35 : vector<1x128xf32> to vector<8x128xf32>
    %37 = arith.addf %33, %36 : vector<8x128xf32>
    %38 = math.tanh %37 : vector<8x128xf32>
    %39 = vector.extract_strided_slice %38 {offsets = [0, 0], sizes = [1, 128], strides = [1, 1]} : vector<8x128xf32> to vector<1x128xf32>
    %c0_25 = arith.constant 0 : index
    %c0_26 = arith.constant 0 : index
    %40 = vector.load %arg3[%c0_25, %c0_26] : memref<2x128xf32, #tpu.memory_space<vmem>>, vector<1x128xf32>
    %41 = arith.mulf %39, %40 : vector<1x128xf32>
    %c1_27 = arith.constant 1 : index
    %c0_28 = arith.constant 0 : index
    %42 = vector.load %arg3[%c1_27, %c0_28] : memref<2x128xf32, #tpu.memory_space<vmem>>, vector<1x128xf32>
    %43 = arith.addf %41, %42 : vector<1x128xf32>
    %c0_29 = arith.constant 0 : index
    %c0_30 = arith.constant 0 : index
    %44 = vector.load %arg4[%c0_29, %c0_30] : memref<1x128xf32, #tpu.memory_space<vmem>>, vector<1x128xf32>
    tpu.vector_store %arg4[%c0_29, %c0_30], %43 {strides = array<i32>} : memref<1x128xf32, #tpu.memory_space<vmem>>, vector<1x128xf32>,
    return
  }
}

</mosaic_0001>

<llo_original>
// kernel: _forward_impl.1
$region0: #{_forward_impl.1}
  #allocation0 [shape = 'u32[]', space=smem, size = 0x4, offset = 0x4, fixed_abs, tag = 'smem constant byte address 0x4 - core index']
  #allocation1 [shape = 'u32[144,128]{1,0:T(1,128)}', space=vmem, size = 0x12000, scoped, tag = 'internal scratch']
  %s0 = inlined_call_operand.vmem [shape: f32[1,128], index: 0, kind: input, shape index: {}]
  %s1 = inlined_call_operand.hbm [shape: bf16[4,128,128], index: 1, kind: input, shape index: {}]
  %s2 = inlined_call_operand.vmem [shape: f32[4,1,128], index: 2, kind: input, shape index: {}]
  %s3 = inlined_call_operand.vmem [shape: f32[2,128], index: 3, kind: input, shape index: {}]
  %s4 = inlined_call_operand.vmem [shape: f32[1,128], index: 4, kind: output, shape index: {}]
  %s5 = sld [smem:[#allocation0]]
  $region30: #{_forward_impl.1} parent=0
    _
  %s7 = ssub.s32 1, %s5
  %s8 = scalar_select 0, %s7, %s5
  $region1: #{_forward_impl.1} parent=0
    #allocation2 [shape = 'u8[131072]{0}', space=vmem, size = 0x20000, scoped, tag = 'input window, operand 1, single buffered']
    #allocation3 [shape = 's32[1]{0}', space=sflag, size = 0x4, scoped, tag = 'scoped memory for _forward_impl.1']
    %9 = vsyncpa [#allocation3], 0
    // Predicated region
    $region2: #{_forward_impl.1} parent=1 // pred_check
      _
    $region3: #{_forward_impl.1} parent=1 // pred_check_branch
      %11 = sbr.rel (0) target = $region5
    $region4: #{_forward_impl.1} parent=1 // pred_region
      _
    $region5: #{_forward_impl.1} parent=1 // pred_fallthru
      _
    // Predicated region
    $region6: #{_forward_impl.1} parent=1 // pred_check
      _
    $region7: #{_forward_impl.1} parent=1 // pred_check_branch
      %13 = sbr.rel (0) target = $region9
    $region8: #{_forward_impl.1} parent=1 // pred_region
      %s15 = ssub.s32 4096, 4096
      %16 = vsyncadd [#allocation3], %s15
      %s17 = sshll.u32 [#allocation2], 4
      %s18 = int_to_ptr.vmem [resolvable:$true] %s17
      %23 = dma.hbm_to_vmem [thread:$0]  %s1, 4096, %s18, [#allocation3], 64, 64, 4
    $region9: #{_forward_impl.1} parent=1 // pred_fallthru
      _
    // Predicated region
    $region10: #{_forward_impl.1} parent=1 // pred_check
      _
    $region11: #{_forward_impl.1} parent=1 // pred_check_branch
      %25 = sbr.rel (0) target = $region13
    $region12: #{_forward_impl.1} parent=1 // pred_region
      _
    $region13: #{_forward_impl.1} parent=1 // pred_fallthru
      _
    // Predicated region
    $region14: #{_forward_impl.1} parent=1 // pred_check
      _
    $region15: #{_forward_impl.1} parent=1 // pred_check_branch
      %27 = sbr.rel (0) target = $region17
    $region16: #{_forward_impl.1} parent=1 // pred_region
      _
    $region17: #{_forward_impl.1} parent=1 // pred_fallthru
      _
    // Predicated region
    $region18: #{_forward_impl.1} parent=1 // pred_check
      _
    $region19: #{_forward_impl.1} parent=1 // pred_check_branch
      %29 = sbr.rel (0) target = $region21
    $region20: #{_forward_impl.1} parent=1 // pred_region
      %30 = dma.done [#allocation3], 4096
    $region21: #{_forward_impl.1} parent=1 // pred_fallthru
      _
    %v32 = vld [vmem:[%s0] sm:$0x1]
    %v34 = vlaneseq
    %v35 = vshrl.u32 %v34, 7
    %v36 = vsub.s32 0, %v35
    %v37 = vrot.slane %v32, %v36
    %v39 = vpack.c.bf16 %v37, %v37
    %v40 = vld [vmem:[#allocation2] sm:$0xf]
    %v41 = vld [vmem:[#allocation2 + $0x4] sm:$0xf]
    %v42 = vld [vmem:[#allocation2 + $0x8] sm:$0xf]
    %v43 = vld [vmem:[#allocation2 + $0xc] sm:$0xf]
    %v44 = vld [vmem:[#allocation2 + $0x10] sm:$0xf]
    %v45 = vld [vmem:[#allocation2 + $0x14] sm:$0xf]
    %v46 = vld [vmem:[#allocation2 + $0x18] sm:$0xf]
    %v47 = vld [vmem:[#allocation2 + $0x1c] sm:$0xf]
    %v48 = vld [vmem:[#allocation2 + $0x20] sm:$0xf]
    %v49 = vld [vmem:[#allocation2 + $0x24] sm:$0xf]
    %v50 = vld [vmem:[#allocation2 + $0x28] sm:$0xf]
    %v51 = vld [vmem:[#allocation2 + $0x2c] sm:$0xf]
    %v52 = vld [vmem:[#allocation2 + $0x30] sm:$0xf]
    %v53 = vld [vmem:[#allocation2 + $0x34] sm:$0xf]
    %v54 = vld [vmem:[#allocation2 + $0x38] sm:$0xf]
    %v55 = vld [vmem:[#allocation2 + $0x3c] sm:$0xf]
    %v56 = vld [vmem:[%s2] sm:$0x1]
    %v58 = vlaneseq
    %v59 = vshrl.u32 %v58, 7
    %v60 = vsub.s32 0, %v59
    %v61 = vrot.slane %v56, %v60
    %v79 = vunpack.c.l.b16 %v40
    %v80 = vunpack.c.l.b16 %v41
    %v81 = vunpack.c.l.b16 %v42
    %v82 = vunpack.c.l.b16 %v43
    %v83 = vunpack.c.l.b16 %v44
    %v84 = vunpack.c.l.b16 %v45
    %v85 = vunpack.c.l.b16 %v46
    %v86 = vunpack.c.l.b16 %v47
    %v87 = vunpack.c.l.b16 %v48
    %v88 = vunpack.c.l.b16 %v49
    %v89 = vunpack.c.l.b16 %v50
    %v90 = vunpack.c.l.b16 %v51
    %v91 = vunpack.c.l.b16 %v52
    %v92 = vunpack.c.l.b16 %v53
    %v93 = vunpack.c.l.b16 %v54
    %v94 = vunpack.c.l.b16 %v55
    %v95 = vpack.c.b16 %v80, %v79
    %v96 = vpack.c.b16 %v82, %v81
    %v97 = vpack.c.b16 %v84, %v83
    %v98 = vpack.c.b16 %v86, %v85
    %v99 = vpack.c.b16 %v88, %v87
    %v100 = vpack.c.b16 %v90, %v89
    %v101 = vpack.c.b16 %v92, %v91
    %v102 = vpack.c.b16 %v94, %v93
    %111 = vmatprep.subr.bf16.mxu0 0
    %112 = vmatpush1.bf16.msra.mxu0 %v102
    %113 = vmatprep.subr.bf16.mxu0 0
    %114 = vmatpush1.bf16.msra.mxu0 %v101
    %115 = vmatprep.subr.bf16.mxu0 0
    %116 = vmatpush1.bf16.msra.mxu0 %v100
    %117 = vmatprep.subr.bf16.mxu0 0
    %118 = vmatpush1.bf16.msra.mxu0 %v99
    %119 = vmatprep.subr.bf16.mxu0 0
    %120 = vmatpush1.bf16.msra.mxu0 %v98
    %121 = vmatprep.subr.bf16.mxu0 0
    %122 = vmatpush1.bf16.msra.mxu0 %v97
    %123 = vmatprep.subr.bf16.mxu0 0
    %124 = vmatpush1.bf16.msra.mxu0 %v96
    %125 = vmatprep.subr.bf16.mxu0 0
    %126 = vmatpush1.bf16.msra.mxu0 %v95
    %127 = vmatprep.subr.bf16.mxu0 0
    %128 = vmatpush2.bf16.msra.mxu0 0
    %129 = vmatprep.subr.bf16.mxu0 0
    %130 = vmatpush2.bf16.msra.mxu0 0
    %131 = vmatprep.subr.bf16.mxu0 0
    %132 = vmatpush2.bf16.msra.mxu0 0
    %133 = vmatprep.subr.bf16.mxu0 0
    %134 = vmatpush2.bf16.msra.mxu0 0
    %135 = vmatprep.subr.bf16.mxu0 0
    %136 = vmatpush2.bf16.msra.mxu0 0
    %137 = vmatprep.subr.bf16.mxu0 0
    %138 = vmatpush2.bf16.msra.mxu0 0
    %139 = vmatprep.subr.bf16.mxu0 0
    %140 = vmatpush2.bf16.msra.mxu0 0
    %141 = vmatprep.subr.bf16.mxu0 0
    %142 = vmatpush2.bf16.msra.mxu0 0
    %143 = vmatprep.mubr.bf16.mxu0 0
    %144 = vmatmul.mubr.bf16.gmra.mxu0 %v39
    %v145 = vpop.f32.mrf.mxu0
    %v146 = vadd.f32 %v61, %v145
    %v147 = vpop.f32.mrf.mxu0
    %v148 = vpop.f32.mrf.mxu0
    %v149 = vpop.f32.mrf.mxu0
    %150 = vdwg.mxu0
    %v151 = vtanh.pop %v146
    %v152 = vpack.c.bf16 %v151, %v151
    %s153 = scalar_lea.vmem [#allocation2], 64
    %v154 = vld [vmem:[%s153] sm:$0xf]
    %v155 = vld [vmem:[%s153 + $0x4] sm:$0xf]
    %v156 = vld [vmem:[%s153 + $0x8] sm:$0xf]
    %v157 = vld [vmem:[%s153 + $0xc] sm:$0xf]
    %v158 = vld [vmem:[%s153 + $0x10] sm:$0xf]
    %v159 = vld [vmem:[%s153 + $0x14] sm:$0xf]
    %v160 = vld [vmem:[%s153 + $0x18] sm:$0xf]
    %v161 = vld [vmem:[%s153 + $0x1c] sm:$0xf]
    %v162 = vld [vmem:[%s153 + $0x20] sm:$0xf]
    %v163 = vld [vmem:[%s153 + $0x24] sm:$0xf]
    %v164 = vld [vmem:[%s153 + $0x28] sm:$0xf]
    %v165 = vld [vmem:[%s153 + $0x2c] sm:$0xf]
    %v166 = vld [vmem:[%s153 + $0x30] sm:$0xf]
    %v167 = vld [vmem:[%s153 + $0x34] sm:$0xf]
    %v168 = vld [vmem:[%s153 + $0x38] sm:$0xf]
    %v169 = vld [vmem:[%s153 + $0x3c] sm:$0xf]
    %s170 = scalar_lea.vmem %s2, 1
    %v171 = vld [vmem:[%s170] sm:$0x1]
    %v173 = vlaneseq
    %v174 = vshrl.u32 %v173, 7
    %v175 = vsub.s32 0, %v174
    %v176 = vrot.slane %v171, %v175
    %v194 = vunpack.c.l.b16 %v154
    %v195 = vunpack.c.l.b16 %v155
    %v196 = vunpack.c.l.b16 %v156
    %v197 = vunpack.c.l.b16 %v157
    %v198 = vunpack.c.l.b16 %v158
    %v199 = vunpack.c.l.b16 %v159
    %v200 = vunpack.c.l.b16 %v160
    %v201 = vunpack.c.l.b16 %v161
    %v202 = vunpack.c.l.b16 %v162
    %v203 = vunpack.c.l.b16 %v163
    %v204 = vunpack.c.l.b16 %v164
    %v205 = vunpack.c.l.b16 %v165
    %v206 = vunpack.c.l.b16 %v166
    %v207 = vunpack.c.l.b16 %v167
    %v208 = vunpack.c.l.b16 %v168
    %v209 = vunpack.c.l.b16 %v169
    %v210 = vpack.c.b16 %v195, %v194
    %v211 = vpack.c.b16 %v197, %v196
    %v212 = vpack.c.b16 %v199, %v198
    %v213 = vpack.c.b16 %v201, %v200
    %v214 = vpack.c.b16 %v203, %v202
    %v215 = vpack.c.b16 %v205, %v204
    %v216 = vpack.c.b16 %v207, %v206
    %v217 = vpack.c.b16 %v209, %v208
    %226 = vmatprep.subr.bf16.mxu0 0
    %227 = vmatpush1.bf16.msra.mxu0 %v217
    %228 = vmatprep.subr.bf16.mxu0 0
    %229 = vmatpush1.bf16.msra.mxu0 %v216
    %230 = vmatprep.subr.bf16.mxu0 0
    %231 = vmatpush1.bf16.msra.mxu0 %v215
    %232 = vmatprep.subr.bf16.mxu0 0
    %233 = vmatpush1.bf16.msra.mxu0 %v214
    %234 = vmatprep.subr.bf16.mxu0 0
    %235 = vmatpush1.bf16.msra.mxu0 %v213
    %236 = vmatprep.subr.bf16.mxu0 0
    %237 = vmatpush1.bf16.msra.mxu0 %v212
    %238 = vmatprep.subr.bf16.mxu0 0
    %239 = vmatpush1.bf16.msra.mxu0 %v211
    %240 = vmatprep.subr.bf16.mxu0 0
    %241 = vmatpush1.bf16.msra.mxu0 %v210
    %242 = vmatprep.subr.bf16.mxu0 0
    %243 = vmatpush2.bf16.msra.mxu0 0
    %244 = vmatprep.subr.bf16.mxu0 0
    %245 = vmatpush2.bf16.msra.mxu0 0
    %246 = vmatprep.subr.bf16.mxu0 0
    %247 = vmatpush2.bf16.msra.mxu0 0
    %248 = vmatprep.subr.bf16.mxu0 0
    %249 = vmatpush2.bf16.msra.mxu0 0
    %250 = vmatprep.subr.bf16.mxu0 0
    %251 = vmatpush2.bf16.msra.mxu0 0
    %252 = vmatprep.subr.bf16.mxu0 0
    %253 = vmatpush2.bf16.msra.mxu0 0
    %254 = vmatprep.subr.bf16.mxu0 0
    %255 = vmatpush2.bf16.msra.mxu0 0
    %256 = vmatprep.subr.bf16.mxu0 0
    %257 = vmatpush2.bf16.msra.mxu0 0
    %258 = vmatprep.mubr.bf16.mxu0 0
    %259 = vmatmul.mubr.bf16.gmra.mxu0 %v152
    %v260 = vpop.f32.mrf.mxu0
    %v261 = vadd.f32 %v176, %v260
    %v262 = vpop.f32.mrf.mxu0
    %v263 = vpop.f32.mrf.mxu0
    %v264 = vpop.f32.mrf.mxu0
    %265 = vdwg.mxu0
    %v266 = vtanh.pop %v261
    %v267 = vpack.c.bf16 %v266, %v266
    %s268 = scalar_lea.vmem [#allocation2], 128
    %v269 = vld [vmem:[%s268] sm:$0xf]
    %v270 = vld [vmem:[%s268 + $0x4] sm:$0xf]
    %v271 = vld [vmem:[%s268 + $0x8] sm:$0xf]
    %v272 = vld [vmem:[%s268 + $0xc] sm:$0xf]
    %v273 = vld [vmem:[%s268 + $0x10] sm:$0xf]
    %v274 = vld [vmem:[%s268 + $0x14] sm:$0xf]
    %v275 = vld [vmem:[%s268 + $0x18] sm:$0xf]
    %v276 = vld [vmem:[%s268 + $0x1c] sm:$0xf]
    %v277 = vld [vmem:[%s268 + $0x20] sm:$0xf]
    %v278 = vld [vmem:[%s268 + $0x24] sm:$0xf]
    %v279 = vld [vmem:[%s268 + $0x28] sm:$0xf]
    %v280 = vld [vmem:[%s268 + $0x2c] sm:$0xf]
    %v281 = vld [vmem:[%s268 + $0x30] sm:$0xf]
    %v282 = vld [vmem:[%s268 + $0x34] sm:$0xf]
    %v283 = vld [vmem:[%s268 + $0x38] sm:$0xf]
    %v284 = vld [vmem:[%s268 + $0x3c] sm:$0xf]
    %s285 = scalar_lea.vmem %s2, 2
    %v286 = vld [vmem:[%s285] sm:$0x1]
    %v288 = vlaneseq
    %v289 = vshrl.u32 %v288, 7
    %v290 = vsub.s32 0, %v289
    %v291 = vrot.slane %v286, %v290
    %v309 = vunpack.c.l.b16 %v269
    %v310 = vunpack.c.l.b16 %v270
    %v311 = vunpack.c.l.b16 %v271
    %v312 = vunpack.c.l.b16 %v272
    %v313 = vunpack.c.l.b16 %v273
    %v314 = vunpack.c.l.b16 %v274
    %v315 = vunpack.c.l.b16 %v275
    %v316 = vunpack.c.l.b16 %v276
    %v317 = vunpack.c.l.b16 %v277
    %v318 = vunpack.c.l.b16 %v278
    %v319 = vunpack.c.l.b16 %v279
    %v320 = vunpack.c.l.b16 %v280
    %v321 = vunpack.c.l.b16 %v281
    %v322 = vunpack.c.l.b16 %v282
    %v323 = vunpack.c.l.b16 %v283
    %v324 = vunpack.c.l.b16 %v284
    %v325 = vpack.c.b16 %v310, %v309
    %v326 = vpack.c.b16 %v312, %v311
    %v327 = vpack.c.b16 %v314, %v313
    %v328 = vpack.c.b16 %v316, %v315
    %v329 = vpack.c.b16 %v318, %v317
    %v330 = vpack.c.b16 %v320, %v319
    %v331 = vpack.c.b16 %v322, %v321
    %v332 = vpack.c.b16 %v324, %v323
    %341 = vmatprep.subr.bf16.mxu0 0
    %342 = vmatpush1.bf16.msra.mxu0 %v332
    %343 = vmatprep.subr.bf16.mxu0 0
    %344 = vmatpush1.bf16.msra.mxu0 %v331
    %345 = vmatprep.subr.bf16.mxu0 0
    %346 = vmatpush1.bf16.msra.mxu0 %v330
    %347 = vmatprep.subr.bf16.mxu0 0
    %348 = vmatpush1.bf16.msra.mxu0 %v329
    %349 = vmatprep.subr.bf16.mxu0 0
    %350 = vmatpush1.bf16.msra.mxu0 %v328
    %351 = vmatprep.subr.bf16.mxu0 0
    %352 = vmatpush1.bf16.msra.mxu0 %v327
    %353 = vmatprep.subr.bf16.mxu0 0
    %354 = vmatpush1.bf16.msra.mxu0 %v326
    %355 = vmatprep.subr.bf16.mxu0 0
    %356 = vmatpush1.bf16.msra.mxu0 %v325
    %357 = vmatprep.subr.bf16.mxu0 0
    %358 = vmatpush2.bf16.msra.mxu0 0
    %359 = vmatprep.subr.bf16.mxu0 0
    %360 = vmatpush2.bf16.msra.mxu0 0
    %361 = vmatprep.subr.bf16.mxu0 0
    %362 = vmatpush2.bf16.msra.mxu0 0
    %363 = vmatprep.subr.bf16.mxu0 0
    %364 = vmatpush2.bf16.msra.mxu0 0
    %365 = vmatprep.subr.bf16.mxu0 0
    %366 = vmatpush2.bf16.msra.mxu0 0
    %367 = vmatprep.subr.bf16.mxu0 0
    %368 = vmatpush2.bf16.msra.mxu0 0
    %369 = vmatprep.subr.bf16.mxu0 0
    %370 = vmatpush2.bf16.msra.mxu0 0
    %371 = vmatprep.subr.bf16.mxu0 0
    %372 = vmatpush2.bf16.msra.mxu0 0
    %373 = vmatprep.mubr.bf16.mxu0 0
    %374 = vmatmul.mubr.bf16.gmra.mxu0 %v267
    %v375 = vpop.f32.mrf.mxu0
    %v376 = vadd.f32 %v291, %v375
    %v377 = vpop.f32.mrf.mxu0
    %v378 = vpop.f32.mrf.mxu0
    %v379 = vpop.f32.mrf.mxu0
    %380 = vdwg.mxu0
    %v381 = vtanh.pop %v376
    %v382 = vpack.c.bf16 %v381, %v381
    %s383 = scalar_lea.vmem [#allocation2], 192
    %v384 = vld [vmem:[%s383] sm:$0xf]
    %v385 = vld [vmem:[%s383 + $0x4] sm:$0xf]
    %v386 = vld [vmem:[%s383 + $0x8] sm:$0xf]
    %v387 = vld [vmem:[%s383 + $0xc] sm:$0xf]
    %v388 = vld [vmem:[%s383 + $0x10] sm:$0xf]
    %v389 = vld [vmem:[%s383 + $0x14] sm:$0xf]
    %v390 = vld [vmem:[%s383 + $0x18] sm:$0xf]
    %v391 = vld [vmem:[%s383 + $0x1c] sm:$0xf]
    %v392 = vld [vmem:[%s383 + $0x20] sm:$0xf]
    %v393 = vld [vmem:[%s383 + $0x24] sm:$0xf]
    %v394 = vld [vmem:[%s383 + $0x28] sm:$0xf]
    %v395 = vld [vmem:[%s383 + $0x2c] sm:$0xf]
    %v396 = vld [vmem:[%s383 + $0x30] sm:$0xf]
    %v397 = vld [vmem:[%s383 + $0x34] sm:$0xf]
    %v398 = vld [vmem:[%s383 + $0x38] sm:$0xf]
    %v399 = vld [vmem:[%s383 + $0x3c] sm:$0xf]
    %s400 = scalar_lea.vmem %s2, 3
    %v401 = vld [vmem:[%s400] sm:$0x1]
    %v403 = vlaneseq
    %v404 = vshrl.u32 %v403, 7
    %v405 = vsub.s32 0, %v404
    %v406 = vrot.slane %v401, %v405
    %v424 = vunpack.c.l.b16 %v384
    %v425 = vunpack.c.l.b16 %v385
    %v426 = vunpack.c.l.b16 %v386
    %v427 = vunpack.c.l.b16 %v387
    %v428 = vunpack.c.l.b16 %v388
    %v429 = vunpack.c.l.b16 %v389
    %v430 = vunpack.c.l.b16 %v390
    %v431 = vunpack.c.l.b16 %v391
    %v432 = vunpack.c.l.b16 %v392
    %v433 = vunpack.c.l.b16 %v393
    %v434 = vunpack.c.l.b16 %v394
    %v435 = vunpack.c.l.b16 %v395
    %v436 = vunpack.c.l.b16 %v396
    %v437 = vunpack.c.l.b16 %v397
    %v438 = vunpack.c.l.b16 %v398
    %v439 = vunpack.c.l.b16 %v399
    %v440 = vpack.c.b16 %v425, %v424
    %v441 = vpack.c.b16 %v427, %v426
    %v442 = vpack.c.b16 %v429, %v428
    %v443 = vpack.c.b16 %v431, %v430
    %v444 = vpack.c.b16 %v433, %v432
    %v445 = vpack.c.b16 %v435, %v434
    %v446 = vpack.c.b16 %v437, %v436
    %v447 = vpack.c.b16 %v439, %v438
    %456 = vmatprep.subr.bf16.mxu0 0
    %457 = vmatpush1.bf16.msra.mxu0 %v447
    %458 = vmatprep.subr.bf16.mxu0 0
    %459 = vmatpush1.bf16.msra.mxu0 %v446
    %460 = vmatprep.subr.bf16.mxu0 0
    %461 = vmatpush1.bf16.msra.mxu0 %v445
    %462 = vmatprep.subr.bf16.mxu0 0
    %463 = vmatpush1.bf16.msra.mxu0 %v444
    %464 = vmatprep.subr.bf16.mxu0 0
    %465 = vmatpush1.bf16.msra.mxu0 %v443
    %466 = vmatprep.subr.bf16.mxu0 0
    %467 = vmatpush1.bf16.msra.mxu0 %v442
    %468 = vmatprep.subr.bf16.mxu0 0
    %469 = vmatpush1.bf16.msra.mxu0 %v441
    %470 = vmatprep.subr.bf16.mxu0 0
    %471 = vmatpush1.bf16.msra.mxu0 %v440
    %472 = vmatprep.subr.bf16.mxu0 0
    %473 = vmatpush2.bf16.msra.mxu0 0
    %474 = vmatprep.subr.bf16.mxu0 0
    %475 = vmatpush2.bf16.msra.mxu0 0
    %476 = vmatprep.subr.bf16.mxu0 0
    %477 = vmatpush2.bf16.msra.mxu0 0
    %478 = vmatprep.subr.bf16.mxu0 0
    %479 = vmatpush2.bf16.msra.mxu0 0
    %480 = vmatprep.subr.bf16.mxu0 0
    %481 = vmatpush2.bf16.msra.mxu0 0
    %482 = vmatprep.subr.bf16.mxu0 0
    %483 = vmatpush2.bf16.msra.mxu0 0
    %484 = vmatprep.subr.bf16.mxu0 0
    %485 = vmatpush2.bf16.msra.mxu0 0
    %486 = vmatprep.subr.bf16.mxu0 0
    %487 = vmatpush2.bf16.msra.mxu0 0
    %488 = vmatprep.mubr.bf16.mxu0 0
    %489 = vmatmul.mubr.bf16.gmra.mxu0 %v382
    %v490 = vpop.f32.mrf.mxu0
    %v491 = vadd.f32 %v406, %v490
    %v492 = vpop.f32.mrf.mxu0
    %v493 = vpop.f32.mrf.mxu0
    %v494 = vpop.f32.mrf.mxu0
    %495 = vdwg.mxu0
    %v496 = vtanh.pop %v491
    %v497 = vld [vmem:[%s3] sm:$0x1]
    %v498 = vmul.f32 %v496, %v497
    %v499 = vld [vmem:[%s3 + $0x1] sm:$0x1]
    %v500 = vadd.f32 %v498, %v499
    %501 = vst [vmem:[%s4] sm:$0x1] %v500
    // Predicated region
    $region22: #{_forward_impl.1} parent=1 // pred_check
      _
    $region23: #{_forward_impl.1} parent=1 // pred_check_branch
      %503 = sbr.rel (0) target = $region25
    $region24: #{_forward_impl.1} parent=1 // pred_region
      _
    $region25: #{_forward_impl.1} parent=1 // pred_fallthru
      _
    // Predicated region
    $region26: #{_forward_impl.1} parent=1 // pred_check
      _
    $region27: #{_forward_impl.1} parent=1 // pred_check_branch
      %505 = sbr.rel (0) target = $region29
    $region28: #{_forward_impl.1} parent=1 // pred_region
      _
    $region29: #{_forward_impl.1} parent=1 // pred_fallthru
      _
    %506 = vsyncpa [#allocation3], 1

</llo_original>
